<compile_context>
chip_gen: v7x
topology: tpu7x:2x2x1
jax: 0.10.0
libtpu: 0.0.40
codegen_flags: <defaults>
</compile_context>

<pallas_src>
import jax
import jax.numpy as jnp
import numpy as np
from jax.experimental import pallas as pl
from jax.experimental.pallas import tpu as pltpu

# ----------------------------- problem dims ---------------------------------
ACTION_DIM = 4
NORMAL_DIM = 4                               # normal_distribution_dim
FULL_ACTION_DIM = ACTION_DIM + NORMAL_DIM    # action concat noise -> D = 8
STATE_DIM = 16                               # raw env state dim
ST_HIDDEN = 32                               # state-transformation hidden width
ST_OUT = 16                                  # state dim fed to inverse / value blocks
VAL_HIDDEN = 32                              # value-block hidden width
BATCH = 8

D = FULL_ACTION_DIM

# -------- packed-weight layout (row offsets are all multiples of 8) ----------
R_STW1 = 0                                   # (STATE_DIM, ST_HIDDEN)   rows   0:16
R_STW2 = R_STW1 + STATE_DIM                  # (ST_HIDDEN, ST_OUT)      rows  16:48
R_WS   = R_STW2 + ST_HIDDEN                  # (ST_OUT, 48)             rows  48:64
R_IWA1 = R_WS + ST_OUT                       # (D, D)                   rows  64:72
R_IWA2 = R_IWA1 + D                          # (D, D)                   rows  72:80
R_VW2  = R_IWA2 + D                          # (VAL_HIDDEN, 1)          rows  80:112
R_LW   = R_VW2 + VAL_HIDDEN                  # (D, 1)                   rows 112:120
W_ROWS = R_LW + D                            # 120
W_COLS = VAL_HIDDEN + 2 * D                  # 48 (fused s-projection: v1|sp1|sp2)

# bias slab: (8, 128) -- one segment per row, each starting at lane 0
B_ROWS, B_COLS = 8, 128


# ------------------------------- kernel -------------------------------------
def inverse_agent_kernel(s_ref, a_ref, r_ref, w_ref, b_ref, out_ref):
    f32 = jnp.float32

    s = s_ref[...]                                               # (B, 16)
    # action concat noise (in-kernel; wrapper concats removed)
    a0 = jnp.concatenate([a_ref[...], r_ref[...]], axis=1)       # (B, 8)

    # static (zero-cost) views into the packed weight slab
    st_w1 = w_ref[R_STW1:R_STW1 + STATE_DIM, 0:ST_HIDDEN]        # (16, 32)
    st_w2 = w_ref[R_STW2:R_STW2 + ST_HIDDEN, 0:ST_OUT]           # (32, 16)
    w_s   = w_ref[R_WS:R_WS + ST_OUT, 0:W_COLS]                  # (16, 48)
    i_wa1 = w_ref[R_IWA1:R_IWA1 + D, 0:D]                        # (8, 8)
    i_wa2 = w_ref[R_IWA2:R_IWA2 + D, 0:D]                        # (8, 8)
    v_w2  = w_ref[R_VW2:R_VW2 + VAL_HIDDEN, 0:1]                 # (32, 1)
    l_w   = w_ref[R_LW:R_LW + D, 0:1]                            # (8, 1)

    # lane-aligned bias rows (all segments start at lane 0)
    st_b1 = b_ref[0:1, 0:ST_HIDDEN]                              # (1, 32)
    st_b2 = b_ref[1:2, 0:ST_OUT]                                 # (1, 16)
    b_s   = b_ref[2:3, 0:W_COLS]                                 # (1, 48)
    v_b2  = b_ref[3:4, 0:1]                                      # (1, 1)
    l_b   = b_ref[4:5, 0:1]                                      # (1, 1)

    # --- StateTransformationBlock: ReLU(Linear) chain ---
    s = jnp.maximum(jnp.dot(s, st_w1, preferred_element_type=f32) + st_b1, 0.0)
    s = jnp.maximum(jnp.dot(s, st_w2, preferred_element_type=f32) + st_b2, 0.0)

    # --- fused projection of the transformed state (one MXU push) ---
    # columns: [0:32] = s@v_w1 + v_b1, [32:40] = s@i_ws1 + i_b1,
    #          [40:48] = s@i_ws2 + i_b2
    p = jnp.dot(s, w_s, preferred_element_type=f32) + b_s        # (B, 48)
    v1  = jnp.maximum(p[:, 0:VAL_HIDDEN], 0.0)                   # value hidden
    sp1 = p[:, VAL_HIDDEN:VAL_HIDDEN + D]
    sp2 = p[:, VAL_HIDDEN + D:VAL_HIDDEN + 2 * D]

    # --- value head: independent of the inverse chain, issues immediately ---
    # ValueBlock relu's every layer (including the last one).
    v_out = jnp.maximum(jnp.dot(v1, v_w2, preferred_element_type=f32) + v_b2,
                        0.0)                                     # (B, 1)

    # --- GradientInverseNet: sequential invertible blocks f(t=0, a0) ---
    g = a0
    g = g + jnp.tanh(jnp.dot(g, i_wa1, preferred_element_type=f32) + sp1)
    g = g + jnp.tanh(jnp.dot(g, i_wa2, preferred_element_type=f32) + sp2)

    # --- odeint euler, times=[0,1]: a1 = a0 + 1.0 * f(0, a0); then ReLU ---
    adv_in = jnp.maximum(a0 + g, 0.0)                            # (B, 8)

    # --- last_layer (no trailing ReLU on the advantage path) ---
    adv = jnp.dot(adv_in, l_w, preferred_element_type=f32) + l_b  # (B, 1)

    out_ref[...] = v_out + adv


# --------------------- one-time host-side parameter packing ------------------
def pack_params(p):
    """Pack all 16 weight/bias tensors into ONE weight slab + ONE bias slab.

    Runs once, in NumPy, at init time -- never on the forward path.
    """
    w = np.zeros((W_ROWS, W_COLS), np.float32)
    w[R_STW1:R_STW1 + STATE_DIM, 0:ST_HIDDEN] = np.asarray(p['st_w1'])
    w[R_STW2:R_STW2 + ST_HIDDEN, 0:ST_OUT] = np.asarray(p['st_w2'])
    w[R_WS:R_WS + ST_OUT, 0:VAL_HIDDEN] = np.asarray(p['v_w1'])
    w[R_WS:R_WS + ST_OUT, VAL_HIDDEN:VAL_HIDDEN + D] = np.asarray(p['i_ws1'])
    w[R_WS:R_WS + ST_OUT, VAL_HIDDEN + D:VAL_HIDDEN + 2 * D] = np.asarray(p['i_ws2'])
    w[R_IWA1:R_IWA1 + D, 0:D] = np.asarray(p['i_wa1'])
    w[R_IWA2:R_IWA2 + D, 0:D] = np.asarray(p['i_wa2'])
    w[R_VW2:R_VW2 + VAL_HIDDEN, 0:1] = np.asarray(p['v_w2'])
    w[R_LW:R_LW + D, 0:1] = np.asarray(p['l_w'])

    b = np.zeros((B_ROWS, B_COLS), np.float32)
    b[0, 0:ST_HIDDEN] = np.asarray(p['st_b1'])[0]
    b[1, 0:ST_OUT] = np.asarray(p['st_b2'])[0]
    b[2, 0:VAL_HIDDEN] = np.asarray(p['v_b1'])[0]
    b[2, VAL_HIDDEN:VAL_HIDDEN + D] = np.asarray(p['i_b1'])[0]
    b[2, VAL_HIDDEN + D:VAL_HIDDEN + 2 * D] = np.asarray(p['i_b2'])[0]
    b[3, 0] = np.asarray(p['v_b2'])[0, 0]
    b[4, 0] = np.asarray(p['l_b'])[0, 0]
    return jnp.asarray(w), jnp.asarray(b)


# ------------------------------ forward --------------------------------------
@jax.jit
def inverse_agent_forward(w_pack, b_pack, state, action, rand):
    """state: (B, STATE_DIM), action: (B, ACTION_DIM), rand: (B, NORMAL_DIM).

    Single grid-less pallas_call; all operands are tiny (~30 KB total) and
    live fully in VMEM, so no pipelining / no megacore sharding.  For large
    caller-side batches keep TB = B (grid = 1) until the B x 24 f32 input
    approaches the scoped VMEM limit; only then introduce a batch grid.
    """
    B = state.shape[0]

    flops = 2 * B * (STATE_DIM * ST_HIDDEN + ST_HIDDEN * ST_OUT
                     + ST_OUT * W_COLS + 2 * D * D + VAL_HIDDEN + D)
    bytes_accessed = 4 * (state.size + action.size + rand.size
                          + w_pack.size + b_pack.size + B)

    vmem = pltpu.MemorySpace.VMEM
    return pl.pallas_call(
        inverse_agent_kernel,
        out_shape=jax.ShapeDtypeStruct((B, 1), jnp.float32),
        in_specs=[pl.BlockSpec(memory_space=vmem)] * 5,
        out_specs=pl.BlockSpec(memory_space=vmem),
        cost_estimate=pl.CostEstimate(
            flops=flops, transcendentals=2 * B * D,
            bytes_accessed=bytes_accessed),
    )(state.astype(jnp.float32), action.astype(jnp.float32),
      rand.astype(jnp.float32), w_pack, b_pack)


# --------------------------- parameter init ----------------------------------
def init_params(key):
    def lin(k, fan_in, fan_out):
        kw, kb = jax.random.split(k)
        lim = 1.0 / np.sqrt(fan_in)
        w = jax.random.uniform(kw, (fan_in, fan_out), jnp.float32, -lim, lim)
        b = jax.random.uniform(kb, (1, fan_out), jnp.float32, -lim, lim)
        return w, b

    ks = jax.random.split(key, 10)
    p = {}
    p['st_w1'], p['st_b1'] = lin(ks[0], STATE_DIM, ST_HIDDEN)
    p['st_w2'], p['st_b2'] = lin(ks[1], ST_HIDDEN, ST_OUT)
    p['i_wa1'], p['i_b1'] = lin(ks[2], FULL_ACTION_DIM, FULL_ACTION_DIM)
    p['i_ws1'], _ = lin(ks[3], ST_OUT, FULL_ACTION_DIM)
    p['i_wa2'], p['i_b2'] = lin(ks[4], FULL_ACTION_DIM, FULL_ACTION_DIM)
    p['i_ws2'], _ = lin(ks[5], ST_OUT, FULL_ACTION_DIM)
    p['v_w1'], p['v_b1'] = lin(ks[6], ST_OUT, VAL_HIDDEN)
    p['v_w2'], p['v_b2'] = lin(ks[7], VAL_HIDDEN, 1)
    p['l_w'], p['l_b'] = lin(ks[8], FULL_ACTION_DIM, 1)
    return p


# --------------------------- pure-JAX reference -------------------------------
def reference_forward(p, state, action, rand):
    a0 = jnp.concatenate([action, rand], axis=1)
    s = jnp.maximum(state @ p['st_w1'] + p['st_b1'], 0.0)
    s = jnp.maximum(s @ p['st_w2'] + p['st_b2'], 0.0)
    g = a0
    g = g + jnp.tanh(g @ p['i_wa1'] + s @ p['i_ws1'] + p['i_b1'])
    g = g + jnp.tanh(g @ p['i_wa2'] + s @ p['i_ws2'] + p['i_b2'])
    adv = jnp.maximum(a0 + g, 0.0) @ p['l_w'] + p['l_b']
    v = jnp.maximum(s @ p['v_w1'] + p['v_b1'], 0.0)
    v = jnp.maximum(v @ p['v_w2'] + p['v_b2'], 0.0)
    return v + adv


# --------------------------------- main ---------------------------------------
if __name__ == "__main__":
    key = jax.random.PRNGKey(0)
    k_param, k_state, k_action, k_rand = jax.random.split(key, 4)

    params = init_params(k_param)
    # pack weight/bias slabs ONCE (host-side NumPy); reused by every call
    w_pack, b_pack = pack_params(params)

    state = jax.random.normal(k_state, (BATCH, STATE_DIM), jnp.float32)
    action = jax.random.normal(k_action, (BATCH, ACTION_DIM), jnp.float32)
    # Normal(0,1).sample((B, normal_distribution_dim))
    rand = jax.random.normal(k_rand, (BATCH, NORMAL_DIM), jnp.float32)

    out = inverse_agent_forward(w_pack, b_pack, state, action, rand)
    out = jax.block_until_ready(out)

    ref = reference_forward(params, state, action, rand)
    np.testing.assert_allclose(np.asarray(out), np.asarray(ref),
                               rtol=1e-4, atol=1e-4)
    assert out.shape == (BATCH, 1)
    print("KERNEL_OK")
</pallas_src>

<mosaic_0001>
module attributes {stable_mosaic.version = 11 : i64} {
  func.func @inverse_agent_kernel(%arg0: memref<8x16xf32, #tpu.memory_space<vmem>>, %arg1: memref<8x4xf32, #tpu.memory_space<vmem>>, %arg2: memref<8x4xf32, #tpu.memory_space<vmem>>, %arg3: memref<120x48xf32, #tpu.memory_space<vmem>>, %arg4: memref<8x128xf32, #tpu.memory_space<vmem>>, %arg5: memref<8x1xf32, #tpu.memory_space<vmem>>) attributes {dimension_semantics = [], scalar_prefetch = 0 : i64, scratch_operands = 0 : i64, tpu.core_type = #tpu.core_type<tc>} {
    %c0 = arith.constant 0 : index
    %c0_0 = arith.constant 0 : index
    %0 = vector.load %arg0[%c0, %c0_0] : memref<8x16xf32, #tpu.memory_space<vmem>>, vector<8x16xf32>
    %c0_1 = arith.constant 0 : index
    %c0_2 = arith.constant 0 : index
    %1 = vector.load %arg1[%c0_1, %c0_2] : memref<8x4xf32, #tpu.memory_space<vmem>>, vector<8x4xf32>
    %c0_3 = arith.constant 0 : index
    %c0_4 = arith.constant 0 : index
    %2 = vector.load %arg2[%c0_3, %c0_4] : memref<8x4xf32, #tpu.memory_space<vmem>>, vector<8x4xf32>
    %3 = tpu.concatenate %1, %2 in 1 : vector<8x4xf32>, vector<8x4xf32> -> vector<8x8xf32>
    %c0_5 = arith.constant 0 : index
    %c0_6 = arith.constant 0 : index
    %4 = vector.load %arg3[%c0_5, %c0_6] : memref<120x48xf32, #tpu.memory_space<vmem>>, vector<16x32xf32>
    %c16 = arith.constant 16 : index
    %c0_7 = arith.constant 0 : index
    %5 = vector.load %arg3[%c16, %c0_7] : memref<120x48xf32, #tpu.memory_space<vmem>>, vector<32x16xf32>
    %c48 = arith.constant 48 : index
    %c0_8 = arith.constant 0 : index
    %6 = vector.load %arg3[%c48, %c0_8] : memref<120x48xf32, #tpu.memory_space<vmem>>, vector<16x48xf32>
    %c64 = arith.constant 64 : index
    %c0_9 = arith.constant 0 : index
    %7 = vector.load %arg3[%c64, %c0_9] : memref<120x48xf32, #tpu.memory_space<vmem>>, vector<8x8xf32>
    %c72 = arith.constant 72 : index
    %c0_10 = arith.constant 0 : index
    %8 = vector.load %arg3[%c72, %c0_10] : memref<120x48xf32, #tpu.memory_space<vmem>>, vector<8x8xf32>
    %c80 = arith.constant 80 : index
    %c0_11 = arith.constant 0 : index
    %9 = vector.load %arg3[%c80, %c0_11] : memref<120x48xf32, #tpu.memory_space<vmem>>, vector<32x1xf32>
    %c112 = arith.constant 112 : index
    %c0_12 = arith.constant 0 : index
    %10 = vector.load %arg3[%c112, %c0_12] : memref<120x48xf32, #tpu.memory_space<vmem>>, vector<8x1xf32>
    %c0_13 = arith.constant 0 : index
    %c0_14 = arith.constant 0 : index
    %11 = vector.load %arg4[%c0_13, %c0_14] : memref<8x128xf32, #tpu.memory_space<vmem>>, vector<1x32xf32>
    %c1 = arith.constant 1 : index
    %c0_15 = arith.constant 0 : index
    %12 = vector.load %arg4[%c1, %c0_15] : memref<8x128xf32, #tpu.memory_space<vmem>>, vector<1x16xf32>
    %c2 = arith.constant 2 : index
    %c0_16 = arith.constant 0 : index
    %13 = vector.load %arg4[%c2, %c0_16] : memref<8x128xf32, #tpu.memory_space<vmem>>, vector<1x48xf32>
    %c3 = arith.constant 3 : index
    %c0_17 = arith.constant 0 : index
    %14 = vector.load %arg4[%c3, %c0_17] : memref<8x128xf32, #tpu.memory_space<vmem>>, vector<1x1xf32>
    %c4 = arith.constant 4 : index
    %c0_18 = arith.constant 0 : index
    %15 = vector.load %arg4[%c4, %c0_18] : memref<8x128xf32, #tpu.memory_space<vmem>>, vector<1x1xf32>
    %cst = arith.constant dense<0.000000e+00> : vector<8x32xf32>
    %16 = tpu.matmul %0, %4, %cst {dimension_numbers = #tpu.dot_dimension_numbers<[1], [0], [0], [1], [0, 0, 1, 1], [], []>} : vector<8x16xf32>, vector<16x32xf32>, vector<8x32xf32> -> vector<8x32xf32>
    %17 = vector.broadcast %11 : vector<1x32xf32> to vector<8x32xf32>
    %18 = arith.addf %16, %17 : vector<8x32xf32>
    %cst_19 = arith.constant 0.000000e+00 : f32
    %19 = vector.broadcast %cst_19 : f32 to vector<8x32xf32>
    %20 = arith.maximumf %18, %19 : vector<8x32xf32>
    %cst_20 = arith.constant dense<0.000000e+00> : vector<8x16xf32>
    %21 = tpu.matmul %20, %5, %cst_20 {dimension_numbers = #tpu.dot_dimension_numbers<[1], [0], [0], [1], [0, 0, 1, 1], [], []>} : vector<8x32xf32>, vector<32x16xf32>, vector<8x16xf32> -> vector<8x16xf32>
    %22 = vector.broadcast %12 : vector<1x16xf32> to vector<8x16xf32>
    %23 = arith.addf %21, %22 : vector<8x16xf32>
    %cst_21 = arith.constant 0.000000e+00 : f32
    %24 = vector.broadcast %cst_21 : f32 to vector<8x16xf32>
    %25 = arith.maximumf %23, %24 : vector<8x16xf32>
    %cst_22 = arith.constant dense<0.000000e+00> : vector<8x48xf32>
    %26 = tpu.matmul %25, %6, %cst_22 {dimension_numbers = #tpu.dot_dimension_numbers<[1], [0], [0], [1], [0, 0, 1, 1], [], []>} : vector<8x16xf32>, vector<16x48xf32>, vector<8x48xf32> -> vector<8x48xf32>
    %27 = vector.broadcast %13 : vector<1x48xf32> to vector<8x48xf32>
    %28 = arith.addf %26, %27 : vector<8x48xf32>
    %29 = vector.extract_strided_slice %28 {offsets = [0, 0], sizes = [8, 32], strides = [1, 1]} : vector<8x48xf32> to vector<8x32xf32>
    %cst_23 = arith.constant 0.000000e+00 : f32
    %30 = vector.broadcast %cst_23 : f32 to vector<8x32xf32>
    %31 = arith.maximumf %29, %30 : vector<8x32xf32>
    %32 = vector.extract_strided_slice %28 {offsets = [0, 32], sizes = [8, 8], strides = [1, 1]} : vector<8x48xf32> to vector<8x8xf32>
    %33 = vector.extract_strided_slice %28 {offsets = [0, 40], sizes = [8, 8], strides = [1, 1]} : vector<8x48xf32> to vector<8x8xf32>
    %cst_24 = arith.constant dense<0.000000e+00> : vector<8x1xf32>
    %34 = tpu.matmul %31, %9, %cst_24 {dimension_numbers = #tpu.dot_dimension_numbers<[1], [0], [0], [1], [0, 0, 1, 1], [], []>} : vector<8x32xf32>, vector<32x1xf32>, vector<8x1xf32> -> vector<8x1xf32>
    %35 = vector.broadcast %14 : vector<1x1xf32> to vector<8x1xf32>
    %36 = arith.addf %34, %35 : vector<8x1xf32>
    %cst_25 = arith.constant 0.000000e+00 : f32
    %37 = vector.broadcast %cst_25 : f32 to vector<8x1xf32>
    %38 = arith.maximumf %36, %37 : vector<8x1xf32>
    %cst_26 = arith.constant dense<0.000000e+00> : vector<8x8xf32>
    %39 = tpu.matmul %3, %7, %cst_26 {dimension_numbers = #tpu.dot_dimension_numbers<[1], [0], [0], [1], [0, 0, 1, 1], [], []>} : vector<8x8xf32>, vector<8x8xf32>, vector<8x8xf32> -> vector<8x8xf32>
    %40 = arith.addf %39, %32 : vector<8x8xf32>
    %41 = math.tanh %40 : vector<8x8xf32>
    %42 = arith.addf %3, %41 : vector<8x8xf32>
    %cst_27 = arith.constant dense<0.000000e+00> : vector<8x8xf32>
    %43 = tpu.matmul %42, %8, %cst_27 {dimension_numbers = #tpu.dot_dimension_numbers<[1], [0], [0], [1], [0, 0, 1, 1], [], []>} : vector<8x8xf32>, vector<8x8xf32>, vector<8x8xf32> -> vector<8x8xf32>
    %44 = arith.addf %43, %33 : vector<8x8xf32>
    %45 = math.tanh %44 : vector<8x8xf32>
    %46 = arith.addf %42, %45 : vector<8x8xf32>
    %47 = arith.addf %3, %46 : vector<8x8xf32>
    %cst_28 = arith.constant 0.000000e+00 : f32
    %48 = vector.broadcast %cst_28 : f32 to vector<8x8xf32>
    %49 = arith.maximumf %47, %48 : vector<8x8xf32>
    %cst_29 = arith.constant dense<0.000000e+00> : vector<8x1xf32>
    %50 = tpu.matmul %49, %10, %cst_29 {dimension_numbers = #tpu.dot_dimension_numbers<[1], [0], [0], [1], [0, 0, 1, 1], [], []>} : vector<8x8xf32>, vector<8x1xf32>, vector<8x1xf32> -> vector<8x1xf32>
    %51 = vector.broadcast %15 : vector<1x1xf32> to vector<8x1xf32>
    %52 = arith.addf %50, %51 : vector<8x1xf32>
    %53 = arith.addf %38, %52 : vector<8x1xf32>
    %c0_30 = arith.constant 0 : index
    %c0_31 = arith.constant 0 : index
    %54 = vector.load %arg5[%c0_30, %c0_31] : memref<8x1xf32, #tpu.memory_space<vmem>>, vector<8x1xf32>
    tpu.vector_store %arg5[%c0_30, %c0_31], %53 {strides = array<i32>} : memref<8x1xf32, #tpu.memory_space<vmem>>, vector<8x1xf32>,
    return
  }
}

</mosaic_0001>

<llo_original>
// kernel: inverse_agent_forward.1
$region0: #{inverse_agent_forward.1}
  #allocation0 [shape = 'u32[]', space=smem, size = 0x4, offset = 0x4, fixed_abs, tag = 'smem constant byte address 0x4 - core index']
  #allocation1 [shape = 'u32[144,128]{1,0:T(1,128)}', space=vmem, size = 0x12000, scoped, tag = 'internal scratch']
  %s0 = inlined_call_operand.vmem [shape: f32[8,16], index: 0, kind: input, shape index: {}]
  %s1 = inlined_call_operand.vmem [shape: f32[8,4], index: 1, kind: input, shape index: {}]
  %s2 = inlined_call_operand.vmem [shape: f32[8,4], index: 2, kind: input, shape index: {}]
  %s3 = inlined_call_operand.vmem [shape: f32[120,48], index: 3, kind: input, shape index: {}]
  %s4 = inlined_call_operand.vmem [shape: f32[8,128], index: 4, kind: input, shape index: {}]
  %s5 = inlined_call_operand.vmem [shape: f32[8,1], index: 5, kind: output, shape index: {}]
  %s6 = sld [smem:[#allocation0]]
  $region30: #{inverse_agent_forward.1} parent=0
    _
  %s8 = ssub.s32 1, %s6
  %s9 = scalar_select 0, %s8, %s6
  // Predicated region
  $region2: #{inverse_agent_forward.1} parent=0 // pred_check
    _
  $region3: #{inverse_agent_forward.1} parent=0 // pred_check_branch
    %11 = sbr.rel (0) target = $region5
  $region4: #{inverse_agent_forward.1} parent=0 // pred_region
    _
  $region5: #{inverse_agent_forward.1} parent=0 // pred_fallthru
    _
  // Predicated region
  $region6: #{inverse_agent_forward.1} parent=0 // pred_check
    _
  $region7: #{inverse_agent_forward.1} parent=0 // pred_check_branch
    %13 = sbr.rel (0) target = $region9
  $region8: #{inverse_agent_forward.1} parent=0 // pred_region
    _
  $region9: #{inverse_agent_forward.1} parent=0 // pred_fallthru
    _
  // Predicated region
  $region10: #{inverse_agent_forward.1} parent=0 // pred_check
    _
  $region11: #{inverse_agent_forward.1} parent=0 // pred_check_branch
    %15 = sbr.rel (0) target = $region13
  $region12: #{inverse_agent_forward.1} parent=0 // pred_region
    _
  $region13: #{inverse_agent_forward.1} parent=0 // pred_fallthru
    _
  // Predicated region
  $region14: #{inverse_agent_forward.1} parent=0 // pred_check
    _
  $region15: #{inverse_agent_forward.1} parent=0 // pred_check_branch
    %17 = sbr.rel (0) target = $region17
  $region16: #{inverse_agent_forward.1} parent=0 // pred_region
    _
  $region17: #{inverse_agent_forward.1} parent=0 // pred_fallthru
    _
  // Predicated region
  $region18: #{inverse_agent_forward.1} parent=0 // pred_check
    _
  $region19: #{inverse_agent_forward.1} parent=0 // pred_check_branch
    %19 = sbr.rel (0) target = $region21
  $region20: #{inverse_agent_forward.1} parent=0 // pred_region
    _
  $region21: #{inverse_agent_forward.1} parent=0 // pred_fallthru
    _
  %v20 = vld [vmem:[%s0] sm:$0xff]
  %v21 = vld [vmem:[%s1] sm:$0xff]
  %v22 = vld [vmem:[%s2] sm:$0xff]
  %24 = vrot.lane.b32.xlu0 %v22, 4
  %v25 = vpop.permute.xlu0 %24
  %vm27 = vcmask 31744
  %v28 = vsel %vm27, %v21, %v25
  %v29 = vld [vmem:[%s3] sm:$0xff]
  %v30 = vld [vmem:[%s3 + $0x8] sm:$0xff]
  %v31 = vld [vmem:[%s3 + $0x10] sm:$0xff]
  %v32 = vld [vmem:[%s3 + $0x18] sm:$0xff]
  %v33 = vld [vmem:[%s3 + $0x20] sm:$0xff]
  %v34 = vld [vmem:[%s3 + $0x28] sm:$0xff]
  %v35 = vld [vmem:[%s3 + $0x30] sm:$0xff]
  %v36 = vld [vmem:[%s3 + $0x38] sm:$0xff]
  %v37 = vld [vmem:[%s3 + $0x40] sm:$0xff]
  %v38 = vld [vmem:[%s3 + $0x48] sm:$0xff]
  %v39 = vld [vmem:[%s3 + $0x50] sm:$0xff]
  %v40 = vld [vmem:[%s3 + $0x58] sm:$0xff]
  %v41 = vld [vmem:[%s3 + $0x60] sm:$0xff]
  %v42 = vld [vmem:[%s3 + $0x68] sm:$0xff]
  %v43 = vld [vmem:[%s3 + $0x70] sm:$0xff]
  %v44 = vld [vmem:[%s4] sm:$0x1]
  %v45 = vld [vmem:[%s4 + $0x1] sm:$0x1]
  %v46 = vld [vmem:[%s4 + $0x2] sm:$0x1]
  %v47 = vld [vmem:[%s4 + $0x3] sm:$0x1]
  %v48 = vld [vmem:[%s4 + $0x4] sm:$0x1]
  %v49 = vlaneseq
  %v50 = vshrl.u32 %v49, 7
  %v51 = vsub.s32 0, %v50
  %v52 = vrot.slane %v44, %v51
  %vm53 = vcmask 130048
  %v55 = vsel %vm53, %v20, 0
  %57 = vmatprep.subr.mxu0 0.0
  %58 = vmatpush1.msra.mxu0 %v29
  %59 = vmatprep.subr.mxu0 0.0
  %60 = vmatpush1.msra.mxu0 %v30
  %61 = vmatprep.subr.mxu0 0.0
  %62 = vmatpush1.msra.mxu0 0.0
  %63 = vmatprep.subr.mxu0 0.0
  %64 = vmatpush1.msra.mxu0 0.0
  %65 = vmatprep.subr.mxu0 0.0
  %66 = vmatpush1.msra.mxu0 0.0
  %67 = vmatprep.subr.mxu0 0.0
  %68 = vmatpush1.msra.mxu0 0.0
  %69 = vmatprep.subr.mxu0 0.0
  %70 = vmatpush1.msra.mxu0 0.0
  %71 = vmatprep.subr.mxu0 0.0
  %72 = vmatpush1.msra.mxu0 0.0
  %73 = vmatprep.subr.mxu0 0.0
  %74 = vmatpush1.msra.mxu0 0.0
  %75 = vmatprep.subr.mxu0 0.0
  %76 = vmatpush1.msra.mxu0 0.0
  %77 = vmatprep.subr.mxu0 0.0
  %78 = vmatpush1.msra.mxu0 0.0
  %79 = vmatprep.subr.mxu0 0.0
  %80 = vmatpush1.msra.mxu0 0.0
  %81 = vmatprep.subr.mxu0 0.0
  %82 = vmatpush1.msra.mxu0 0.0
  %83 = vmatprep.subr.mxu0 0.0
  %84 = vmatpush1.msra.mxu0 0.0
  %85 = vmatprep.subr.mxu0 0.0
  %86 = vmatpush1.msra.mxu0 0.0
  %87 = vmatprep.subr.mxu0 0.0
  %88 = vmatpush1.msra.mxu0 0.0
  %89 = vmatprep.subr.mxu0 0.0
  %90 = vmatpush1.msra.mxu0 0.0
  %91 = vmatprep.subr.mxu0 0.0
  %92 = vmatpush1.msra.mxu0 0.0
  %93 = vmatprep.subr.mxu0 0.0
  %94 = vmatpush1.msra.mxu0 0.0
  %95 = vmatprep.subr.mxu0 0.0
  %96 = vmatpush1.msra.mxu0 0.0
  %97 = vmatprep.subr.mxu0 0.0
  %98 = vmatpush1.msra.mxu0 0.0
  %99 = vmatprep.subr.mxu0 0.0
  %100 = vmatpush1.msra.mxu0 0.0
  %101 = vmatprep.subr.mxu0 0.0
  %102 = vmatpush1.msra.mxu0 0.0
  %103 = vmatprep.subr.mxu0 0.0
  %104 = vmatpush1.msra.mxu0 0.0
  %105 = vmatprep.subr.mxu0 0.0
  %106 = vmatpush1.msra.mxu0 0.0
  %107 = vmatprep.subr.mxu0 0.0
  %108 = vmatpush1.msra.mxu0 0.0
  %109 = vmatprep.subr.mxu0 0.0
  %110 = vmatpush1.msra.mxu0 0.0
  %111 = vmatprep.subr.mxu0 0.0
  %112 = vmatpush1.msra.mxu0 0.0
  %113 = vmatprep.subr.mxu0 0.0
  %114 = vmatpush1.msra.mxu0 0.0
  %115 = vmatprep.subr.mxu0 0.0
  %116 = vmatpush1.msra.mxu0 0.0
  %117 = vmatprep.subr.mxu0 0.0
  %118 = vmatpush1.msra.mxu0 0.0
  %119 = vmatprep.subr.mxu0 0.0
  %120 = vmatpush1.msra.mxu0 0.0
  %121 = vmatprep.mubr.f32.mxu0 0.0
  %122 = vmatmul.mubr.f32.gmra.mrb[0].mxu0 %v55
  %v123 = vpop.f32.mrb[0].mxu0
  %v124 = vadd.f32 %v52, %v123
  %v125 = vpop.f32.mrb[0].mxu0
  %126 = vdwg.mxu0
  %v127 = vmax.f32 %v124, 0.0
  %v128 = vlaneseq
  %v129 = vshrl.u32 %v128, 7
  %v130 = vsub.s32 0, %v129
  %v131 = vrot.slane %v45, %v130
  %vm132 = vcmask 261120
  %v134 = vsel %vm132, %v127, 0
  %136 = vmatprep.subr.mxu0 0.0
  %137 = vmatpush1.msra.mxu0 %v31
  %138 = vmatprep.subr.mxu0 0.0
  %139 = vmatpush1.msra.mxu0 %v32
  %140 = vmatprep.subr.mxu0 0.0
  %141 = vmatpush1.msra.mxu0 %v33
  %142 = vmatprep.subr.mxu0 0.0
  %143 = vmatpush1.msra.mxu0 %v34
  %144 = vmatprep.subr.mxu0 0.0
  %145 = vmatpush1.msra.mxu0 0.0
  %146 = vmatprep.subr.mxu0 0.0
  %147 = vmatpush1.msra.mxu0 0.0
  %148 = vmatprep.subr.mxu0 0.0
  %149 = vmatpush1.msra.mxu0 0.0
  %150 = vmatprep.subr.mxu0 0.0
  %151 = vmatpush1.msra.mxu0 0.0
  %152 = vmatprep.subr.mxu0 0.0
  %153 = vmatpush1.msra.mxu0 0.0
  %154 = vmatprep.subr.mxu0 0.0
  %155 = vmatpush1.msra.mxu0 0.0
  %156 = vmatprep.subr.mxu0 0.0
  %157 = vmatpush1.msra.mxu0 0.0
  %158 = vmatprep.subr.mxu0 0.0
  %159 = vmatpush1.msra.mxu0 0.0
  %160 = vmatprep.subr.mxu0 0.0
  %161 = vmatpush1.msra.mxu0 0.0
  %162 = vmatprep.subr.mxu0 0.0
  %163 = vmatpush1.msra.mxu0 0.0
  %164 = vmatprep.subr.mxu0 0.0
  %165 = vmatpush1.msra.mxu0 0.0
  %166 = vmatprep.subr.mxu0 0.0
  %167 = vmatpush1.msra.mxu0 0.0
  %168 = vmatprep.subr.mxu0 0.0
  %169 = vmatpush1.msra.mxu0 0.0
  %170 = vmatprep.subr.mxu0 0.0
  %171 = vmatpush1.msra.mxu0 0.0
  %172 = vmatprep.subr.mxu0 0.0
  %173 = vmatpush1.msra.mxu0 0.0
  %174 = vmatprep.subr.mxu0 0.0
  %175 = vmatpush1.msra.mxu0 0.0
  %176 = vmatprep.subr.mxu0 0.0
  %177 = vmatpush1.msra.mxu0 0.0
  %178 = vmatprep.subr.mxu0 0.0
  %179 = vmatpush1.msra.mxu0 0.0
  %180 = vmatprep.subr.mxu0 0.0
  %181 = vmatpush1.msra.mxu0 0.0
  %182 = vmatprep.subr.mxu0 0.0
  %183 = vmatpush1.msra.mxu0 0.0
  %184 = vmatprep.subr.mxu0 0.0
  %185 = vmatpush1.msra.mxu0 0.0
  %186 = vmatprep.subr.mxu0 0.0
  %187 = vmatpush1.msra.mxu0 0.0
  %188 = vmatprep.subr.mxu0 0.0
  %189 = vmatpush1.msra.mxu0 0.0
  %190 = vmatprep.subr.mxu0 0.0
  %191 = vmatpush1.msra.mxu0 0.0
  %192 = vmatprep.subr.mxu0 0.0
  %193 = vmatpush1.msra.mxu0 0.0
  %194 = vmatprep.subr.mxu0 0.0
  %195 = vmatpush1.msra.mxu0 0.0
  %196 = vmatprep.subr.mxu0 0.0
  %197 = vmatpush1.msra.mxu0 0.0
  %198 = vmatprep.subr.mxu0 0.0
  %199 = vmatpush1.msra.mxu0 0.0
  %200 = vmatprep.mubr.f32.mxu0 0.0
  %201 = vmatmul.mubr.f32.gmra.mrb[0].mxu0 %v134
  %v202 = vpop.f32.mrb[0].mxu0
  %v203 = vadd.f32 %v131, %v202
  %v204 = vpop.f32.mrb[0].mxu0
  %205 = vdwg.mxu0
  %v206 = vmax.f32 %v203, 0.0
  %v207 = vlaneseq
  %v208 = vshrl.u32 %v207, 7
  %v209 = vsub.s32 0, %v208
  %v210 = vrot.slane %v46, %v209
  %v212 = vsel %vm53, %v206, 0
  %214 = vmatprep.subr.mxu0 0.0
  %215 = vmatpush1.msra.mxu0 %v35
  %216 = vmatprep.subr.mxu0 0.0
  %217 = vmatpush1.msra.mxu0 %v36
  %218 = vmatprep.subr.mxu0 0.0
  %219 = vmatpush1.msra.mxu0 0.0
  %220 = vmatprep.subr.mxu0 0.0
  %221 = vmatpush1.msra.mxu0 0.0
  %222 = vmatprep.subr.mxu0 0.0
  %223 = vmatpush1.msra.mxu0 0.0
  %224 = vmatprep.subr.mxu0 0.0
  %225 = vmatpush1.msra.mxu0 0.0
  %226 = vmatprep.subr.mxu0 0.0
  %227 = vmatpush1.msra.mxu0 0.0
  %228 = vmatprep.subr.mxu0 0.0
  %229 = vmatpush1.msra.mxu0 0.0
  %230 = vmatprep.subr.mxu0 0.0
  %231 = vmatpush1.msra.mxu0 0.0
  %232 = vmatprep.subr.mxu0 0.0
  %233 = vmatpush1.msra.mxu0 0.0
  %234 = vmatprep.subr.mxu0 0.0
  %235 = vmatpush1.msra.mxu0 0.0
  %236 = vmatprep.subr.mxu0 0.0
  %237 = vmatpush1.msra.mxu0 0.0
  %238 = vmatprep.subr.mxu0 0.0
  %239 = vmatpush1.msra.mxu0 0.0
  %240 = vmatprep.subr.mxu0 0.0
  %241 = vmatpush1.msra.mxu0 0.0
  %242 = vmatprep.subr.mxu0 0.0
  %243 = vmatpush1.msra.mxu0 0.0
  %244 = vmatprep.subr.mxu0 0.0
  %245 = vmatpush1.msra.mxu0 0.0
  %246 = vmatprep.subr.mxu0 0.0
  %247 = vmatpush1.msra.mxu0 0.0
  %248 = vmatprep.subr.mxu0 0.0
  %249 = vmatpush1.msra.mxu0 0.0
  %250 = vmatprep.subr.mxu0 0.0
  %251 = vmatpush1.msra.mxu0 0.0
  %252 = vmatprep.subr.mxu0 0.0
  %253 = vmatpush1.msra.mxu0 0.0
  %254 = vmatprep.subr.mxu0 0.0
  %255 = vmatpush1.msra.mxu0 0.0
  %256 = vmatprep.subr.mxu0 0.0
  %257 = vmatpush1.msra.mxu0 0.0
  %258 = vmatprep.subr.mxu0 0.0
  %259 = vmatpush1.msra.mxu0 0.0
  %260 = vmatprep.subr.mxu0 0.0
  %261 = vmatpush1.msra.mxu0 0.0
  %262 = vmatprep.subr.mxu0 0.0
  %263 = vmatpush1.msra.mxu0 0.0
  %264 = vmatprep.subr.mxu0 0.0
  %265 = vmatpush1.msra.mxu0 0.0
  %266 = vmatprep.subr.mxu0 0.0
  %267 = vmatpush1.msra.mxu0 0.0
  %268 = vmatprep.subr.mxu0 0.0
  %269 = vmatpush1.msra.mxu0 0.0
  %270 = vmatprep.subr.mxu0 0.0
  %271 = vmatpush1.msra.mxu0 0.0
  %272 = vmatprep.subr.mxu0 0.0
  %273 = vmatpush1.msra.mxu0 0.0
  %274 = vmatprep.subr.mxu0 0.0
  %275 = vmatpush1.msra.mxu0 0.0
  %276 = vmatprep.subr.mxu0 0.0
  %277 = vmatpush1.msra.mxu0 0.0
  %278 = vmatprep.mubr.f32.mxu0 0.0
  %279 = vmatmul.mubr.f32.gmra.mrb[0].mxu0 %v212
  %v280 = vpop.f32.mrb[0].mxu0
  %v281 = vadd.f32 %v210, %v280
  %v282 = vpop.f32.mrb[0].mxu0
  %283 = vdwg.mxu0
  %v284 = vmax.f32 %v281, 0.0
  %v285 = vlaneseq
  %v286 = vshrl.u32 %v285, 7
  %v287 = vsub.s32 0, %v286
  %v288 = vrot.slane %v47, %v287
  %v290 = vsel %vm132, %v284, 0
  %292 = vmatprep.subr.mxu0 0.0
  %293 = vmatpush1.msra.mxu0 %v39
  %294 = vmatprep.subr.mxu0 0.0
  %295 = vmatpush1.msra.mxu0 %v40
  %296 = vmatprep.subr.mxu0 0.0
  %297 = vmatpush1.msra.mxu0 %v41
  %298 = vmatprep.subr.mxu0 0.0
  %299 = vmatpush1.msra.mxu0 %v42
  %300 = vmatprep.subr.mxu0 0.0
  %301 = vmatpush1.msra.mxu0 0.0
  %302 = vmatprep.subr.mxu0 0.0
  %303 = vmatpush1.msra.mxu0 0.0
  %304 = vmatprep.subr.mxu0 0.0
  %305 = vmatpush1.msra.mxu0 0.0
  %306 = vmatprep.subr.mxu0 0.0
  %307 = vmatpush1.msra.mxu0 0.0
  %308 = vmatprep.subr.mxu0 0.0
  %309 = vmatpush1.msra.mxu0 0.0
  %310 = vmatprep.subr.mxu0 0.0
  %311 = vmatpush1.msra.mxu0 0.0
  %312 = vmatprep.subr.mxu0 0.0
  %313 = vmatpush1.msra.mxu0 0.0
  %314 = vmatprep.subr.mxu0 0.0
  %315 = vmatpush1.msra.mxu0 0.0
  %316 = vmatprep.subr.mxu0 0.0
  %317 = vmatpush1.msra.mxu0 0.0
  %318 = vmatprep.subr.mxu0 0.0
  %319 = vmatpush1.msra.mxu0 0.0
  %320 = vmatprep.subr.mxu0 0.0
  %321 = vmatpush1.msra.mxu0 0.0
  %322 = vmatprep.subr.mxu0 0.0
  %323 = vmatpush1.msra.mxu0 0.0
  %324 = vmatprep.subr.mxu0 0.0
  %325 = vmatpush1.msra.mxu0 0.0
  %326 = vmatprep.subr.mxu0 0.0
  %327 = vmatpush1.msra.mxu0 0.0
  %328 = vmatprep.subr.mxu0 0.0
  %329 = vmatpush1.msra.mxu0 0.0
  %330 = vmatprep.subr.mxu0 0.0
  %331 = vmatpush1.msra.mxu0 0.0
  %332 = vmatprep.subr.mxu0 0.0
  %333 = vmatpush1.msra.mxu0 0.0
  %334 = vmatprep.subr.mxu0 0.0
  %335 = vmatpush1.msra.mxu0 0.0
  %336 = vmatprep.subr.mxu0 0.0
  %337 = vmatpush1.msra.mxu0 0.0
  %338 = vmatprep.subr.mxu0 0.0
  %339 = vmatpush1.msra.mxu0 0.0
  %340 = vmatprep.subr.mxu0 0.0
  %341 = vmatpush1.msra.mxu0 0.0
  %342 = vmatprep.subr.mxu0 0.0
  %343 = vmatpush1.msra.mxu0 0.0
  %344 = vmatprep.subr.mxu0 0.0
  %345 = vmatpush1.msra.mxu0 0.0
  %346 = vmatprep.subr.mxu0 0.0
  %347 = vmatpush1.msra.mxu0 0.0
  %348 = vmatprep.subr.mxu0 0.0
  %349 = vmatpush1.msra.mxu0 0.0
  %350 = vmatprep.subr.mxu0 0.0
  %351 = vmatpush1.msra.mxu0 0.0
  %352 = vmatprep.subr.mxu0 0.0
  %353 = vmatpush1.msra.mxu0 0.0
  %354 = vmatprep.subr.mxu0 0.0
  %355 = vmatpush1.msra.mxu0 0.0
  %356 = vmatprep.mubr.f32.mxu0 0.0
  %357 = vmatmul.mubr.f32.gmra.mrb[0].mxu0 %v290
  %v358 = vpop.f32.mrb[0].mxu0
  %v359 = vadd.f32 %v288, %v358
  %v360 = vpop.f32.mrb[0].mxu0
  %361 = vdwg.mxu0
  %v362 = vmax.f32 %v359, 0.0
  %364 = vrot.lane.b32.xlu0 %v281, 96
  %v365 = vpop.permute.xlu0 %364
  %vm367 = vcmask 64512
  %v369 = vsel %vm367, %v28, 0
  %371 = vmatprep.subr.mxu0 0.0
  %372 = vmatpush1.msra.mxu0 %v37
  %373 = vmatprep.subr.mxu0 0.0
  %374 = vmatpush1.msra.mxu0 0.0
  %375 = vmatprep.subr.mxu0 0.0
  %376 = vmatpush1.msra.mxu0 0.0
  %377 = vmatprep.subr.mxu0 0.0
  %378 = vmatpush1.msra.mxu0 0.0
  %379 = vmatprep.subr.mxu0 0.0
  %380 = vmatpush1.msra.mxu0 0.0
  %381 = vmatprep.subr.mxu0 0.0
  %382 = vmatpush1.msra.mxu0 0.0
  %383 = vmatprep.subr.mxu0 0.0
  %384 = vmatpush1.msra.mxu0 0.0
  %385 = vmatprep.subr.mxu0 0.0
  %386 = vmatpush1.msra.mxu0 0.0
  %387 = vmatprep.subr.mxu0 0.0
  %388 = vmatpush1.msra.mxu0 0.0
  %389 = vmatprep.subr.mxu0 0.0
  %390 = vmatpush1.msra.mxu0 0.0
  %391 = vmatprep.subr.mxu0 0.0
  %392 = vmatpush1.msra.mxu0 0.0
  %393 = vmatprep.subr.mxu0 0.0
  %394 = vmatpush1.msra.mxu0 0.0
  %395 = vmatprep.subr.mxu0 0.0
  %396 = vmatpush1.msra.mxu0 0.0
  %397 = vmatprep.subr.mxu0 0.0
  %398 = vmatpush1.msra.mxu0 0.0
  %399 = vmatprep.subr.mxu0 0.0
  %400 = vmatpush1.msra.mxu0 0.0
  %401 = vmatprep.subr.mxu0 0.0
  %402 = vmatpush1.msra.mxu0 0.0
  %403 = vmatprep.subr.mxu0 0.0
  %404 = vmatpush1.msra.mxu0 0.0
  %405 = vmatprep.subr.mxu0 0.0
  %406 = vmatpush1.msra.mxu0 0.0
  %407 = vmatprep.subr.mxu0 0.0
  %408 = vmatpush1.msra.mxu0 0.0
  %409 = vmatprep.subr.mxu0 0.0
  %410 = vmatpush1.msra.mxu0 0.0
  %411 = vmatprep.subr.mxu0 0.0
  %412 = vmatpush1.msra.mxu0 0.0
  %413 = vmatprep.subr.mxu0 0.0
  %414 = vmatpush1.msra.mxu0 0.0
  %415 = vmatprep.subr.mxu0 0.0
  %416 = vmatpush1.msra.mxu0 0.0
  %417 = vmatprep.subr.mxu0 0.0
  %418 = vmatpush1.msra.mxu0 0.0
  %419 = vmatprep.subr.mxu0 0.0
  %420 = vmatpush1.msra.mxu0 0.0
  %421 = vmatprep.subr.mxu0 0.0
  %422 = vmatpush1.msra.mxu0 0.0
  %423 = vmatprep.subr.mxu0 0.0
  %424 = vmatpush1.msra.mxu0 0.0
  %425 = vmatprep.subr.mxu0 0.0
  %426 = vmatpush1.msra.mxu0 0.0
  %427 = vmatprep.subr.mxu0 0.0
  %428 = vmatpush1.msra.mxu0 0.0
  %429 = vmatprep.subr.mxu0 0.0
  %430 = vmatpush1.msra.mxu0 0.0
  %431 = vmatprep.subr.mxu0 0.0
  %432 = vmatpush1.msra.mxu0 0.0
  %433 = vmatprep.subr.mxu0 0.0
  %434 = vmatpush1.msra.mxu0 0.0
  %435 = vmatprep.mubr.f32.mxu0 0.0
  %436 = vmatmul.mubr.f32.gmra.mrb[0].mxu0 %v369
  %v437 = vpop.f32.mrb[0].mxu0
  %v438 = vadd.f32 %v365, %v437
  %v439 = vpop.f32.mrb[0].mxu0
  %440 = vdwg.mxu0
  %v441 = vtanh.pop %v438
  %v442 = vadd.f32 %v28, %v441
  %443 = vrot.lane.b32.xlu0 %v281, 88
  %v444 = vpop.permute.xlu0 %443
  %v447 = vsel %vm367, %v442, 0
  %449 = vmatprep.subr.mxu0 0.0
  %450 = vmatpush1.msra.mxu0 %v38
  %451 = vmatprep.subr.mxu0 0.0
  %452 = vmatpush1.msra.mxu0 0.0
  %453 = vmatprep.subr.mxu0 0.0
  %454 = vmatpush1.msra.mxu0 0.0
  %455 = vmatprep.subr.mxu0 0.0
  %456 = vmatpush1.msra.mxu0 0.0
  %457 = vmatprep.subr.mxu0 0.0
  %458 = vmatpush1.msra.mxu0 0.0
  %459 = vmatprep.subr.mxu0 0.0
  %460 = vmatpush1.msra.mxu0 0.0
  %461 = vmatprep.subr.mxu0 0.0
  %462 = vmatpush1.msra.mxu0 0.0
  %463 = vmatprep.subr.mxu0 0.0
  %464 = vmatpush1.msra.mxu0 0.0
  %465 = vmatprep.subr.mxu0 0.0
  %466 = vmatpush1.msra.mxu0 0.0
  %467 = vmatprep.subr.mxu0 0.0
  %468 = vmatpush1.msra.mxu0 0.0
  %469 = vmatprep.subr.mxu0 0.0
  %470 = vmatpush1.msra.mxu0 0.0
  %471 = vmatprep.subr.mxu0 0.0
  %472 = vmatpush1.msra.mxu0 0.0
  %473 = vmatprep.subr.mxu0 0.0
  %474 = vmatpush1.msra.mxu0 0.0
  %475 = vmatprep.subr.mxu0 0.0
  %476 = vmatpush1.msra.mxu0 0.0
  %477 = vmatprep.subr.mxu0 0.0
  %478 = vmatpush1.msra.mxu0 0.0
  %479 = vmatprep.subr.mxu0 0.0
  %480 = vmatpush1.msra.mxu0 0.0
  %481 = vmatprep.subr.mxu0 0.0
  %482 = vmatpush1.msra.mxu0 0.0
  %483 = vmatprep.subr.mxu0 0.0
  %484 = vmatpush1.msra.mxu0 0.0
  %485 = vmatprep.subr.mxu0 0.0
  %486 = vmatpush1.msra.mxu0 0.0
  %487 = vmatprep.subr.mxu0 0.0
  %488 = vmatpush1.msra.mxu0 0.0
  %489 = vmatprep.subr.mxu0 0.0
  %490 = vmatpush1.msra.mxu0 0.0
  %491 = vmatprep.subr.mxu0 0.0
  %492 = vmatpush1.msra.mxu0 0.0
  %493 = vmatprep.subr.mxu0 0.0
  %494 = vmatpush1.msra.mxu0 0.0
  %495 = vmatprep.subr.mxu0 0.0
  %496 = vmatpush1.msra.mxu0 0.0
  %497 = vmatprep.subr.mxu0 0.0
  %498 = vmatpush1.msra.mxu0 0.0
  %499 = vmatprep.subr.mxu0 0.0
  %500 = vmatpush1.msra.mxu0 0.0
  %501 = vmatprep.subr.mxu0 0.0
  %502 = vmatpush1.msra.mxu0 0.0
  %503 = vmatprep.subr.mxu0 0.0
  %504 = vmatpush1.msra.mxu0 0.0
  %505 = vmatprep.subr.mxu0 0.0
  %506 = vmatpush1.msra.mxu0 0.0
  %507 = vmatprep.subr.mxu0 0.0
  %508 = vmatpush1.msra.mxu0 0.0
  %509 = vmatprep.subr.mxu0 0.0
  %510 = vmatpush1.msra.mxu0 0.0
  %511 = vmatprep.subr.mxu0 0.0
  %512 = vmatpush1.msra.mxu0 0.0
  %513 = vmatprep.mubr.f32.mxu0 0.0
  %514 = vmatmul.mubr.f32.gmra.mrb[0].mxu0 %v447
  %v515 = vpop.f32.mrb[0].mxu0
  %v516 = vadd.f32 %v444, %v515
  %v517 = vpop.f32.mrb[0].mxu0
  %518 = vdwg.mxu0
  %v519 = vtanh.pop %v516
  %v520 = vadd.f32 %v442, %v519
  %v521 = vadd.f32 %v28, %v520
  %v522 = vmax.f32 %v521, 0.0
  %v523 = vlaneseq
  %v524 = vshrl.u32 %v523, 7
  %v525 = vsub.s32 0, %v524
  %v526 = vrot.slane %v48, %v525
  %v528 = vsel %vm367, %v522, 0
  %530 = vmatprep.subr.mxu0 0.0
  %531 = vmatpush1.msra.mxu0 %v43
  %532 = vmatprep.subr.mxu0 0.0
  %533 = vmatpush1.msra.mxu0 0.0
  %534 = vmatprep.subr.mxu0 0.0
  %535 = vmatpush1.msra.mxu0 0.0
  %536 = vmatprep.subr.mxu0 0.0
  %537 = vmatpush1.msra.mxu0 0.0
  %538 = vmatprep.subr.mxu0 0.0
  %539 = vmatpush1.msra.mxu0 0.0
  %540 = vmatprep.subr.mxu0 0.0
  %541 = vmatpush1.msra.mxu0 0.0
  %542 = vmatprep.subr.mxu0 0.0
  %543 = vmatpush1.msra.mxu0 0.0
  %544 = vmatprep.subr.mxu0 0.0
  %545 = vmatpush1.msra.mxu0 0.0
  %546 = vmatprep.subr.mxu0 0.0
  %547 = vmatpush1.msra.mxu0 0.0
  %548 = vmatprep.subr.mxu0 0.0
  %549 = vmatpush1.msra.mxu0 0.0
  %550 = vmatprep.subr.mxu0 0.0
  %551 = vmatpush1.msra.mxu0 0.0
  %552 = vmatprep.subr.mxu0 0.0
  %553 = vmatpush1.msra.mxu0 0.0
  %554 = vmatprep.subr.mxu0 0.0
  %555 = vmatpush1.msra.mxu0 0.0
  %556 = vmatprep.subr.mxu0 0.0
  %557 = vmatpush1.msra.mxu0 0.0
  %558 = vmatprep.subr.mxu0 0.0
  %559 = vmatpush1.msra.mxu0 0.0
  %560 = vmatprep.subr.mxu0 0.0
  %561 = vmatpush1.msra.mxu0 0.0
  %562 = vmatprep.subr.mxu0 0.0
  %563 = vmatpush1.msra.mxu0 0.0
  %564 = vmatprep.subr.mxu0 0.0
  %565 = vmatpush1.msra.mxu0 0.0
  %566 = vmatprep.subr.mxu0 0.0
  %567 = vmatpush1.msra.mxu0 0.0
  %568 = vmatprep.subr.mxu0 0.0
  %569 = vmatpush1.msra.mxu0 0.0
  %570 = vmatprep.subr.mxu0 0.0
  %571 = vmatpush1.msra.mxu0 0.0
  %572 = vmatprep.subr.mxu0 0.0
  %573 = vmatpush1.msra.mxu0 0.0
  %574 = vmatprep.subr.mxu0 0.0
  %575 = vmatpush1.msra.mxu0 0.0
  %576 = vmatprep.subr.mxu0 0.0
  %577 = vmatpush1.msra.mxu0 0.0
  %578 = vmatprep.subr.mxu0 0.0
  %579 = vmatpush1.msra.mxu0 0.0
  %580 = vmatprep.subr.mxu0 0.0
  %581 = vmatpush1.msra.mxu0 0.0
  %582 = vmatprep.subr.mxu0 0.0
  %583 = vmatpush1.msra.mxu0 0.0
  %584 = vmatprep.subr.mxu0 0.0
  %585 = vmatpush1.msra.mxu0 0.0
  %586 = vmatprep.subr.mxu0 0.0
  %587 = vmatpush1.msra.mxu0 0.0
  %588 = vmatprep.subr.mxu0 0.0
  %589 = vmatpush1.msra.mxu0 0.0
  %590 = vmatprep.subr.mxu0 0.0
  %591 = vmatpush1.msra.mxu0 0.0
  %592 = vmatprep.subr.mxu0 0.0
  %593 = vmatpush1.msra.mxu0 0.0
  %594 = vmatprep.mubr.f32.mxu0 0.0
  %595 = vmatmul.mubr.f32.gmra.mrb[0].mxu0 %v528
  %v596 = vpop.f32.mrb[0].mxu0
  %v597 = vadd.f32 %v526, %v596
  %v598 = vpop.f32.mrb[0].mxu0
  %599 = vdwg.mxu0
  %v600 = vadd.f32 %v362, %v597
  %vm601 = vcmask 7168
  %602 = vst.msk [vmem:[%s5] sm:$0xff] %vm601, %v600
  // Predicated region
  $region22: #{inverse_agent_forward.1} parent=0 // pred_check
    _
  $region23: #{inverse_agent_forward.1} parent=0 // pred_check_branch
    %604 = sbr.rel (0) target = $region25
  $region24: #{inverse_agent_forward.1} parent=0 // pred_region
    _
  $region25: #{inverse_agent_forward.1} parent=0 // pred_fallthru
    _
  // Predicated region
  $region26: #{inverse_agent_forward.1} parent=0 // pred_check
    _
  $region27: #{inverse_agent_forward.1} parent=0 // pred_check_branch
    %606 = sbr.rel (0) target = $region29
  $region28: #{inverse_agent_forward.1} parent=0 // pred_region
    _
  $region29: #{inverse_agent_forward.1} parent=0 // pred_fallthru
    _

</llo_original>
